<compile_context>
chip_gen: v6e
topology: v6e:2x2x1
jax: 0.10.0
libtpu: 0.0.40
codegen_flags: <defaults>
</compile_context>

<pallas_src>
import math
import jax
import jax.numpy as jnp
from jax import lax
from jax.experimental import pallas as pl
from jax.experimental.pallas import tpu as pltpu

_INV_SQRT2 = 1.0 / math.sqrt(2.0)
_LN_EPS = 1e-12


def _round_up(x, m):
    return pl.cdiv(x, m) * m


# ---------------------------------------------------------------------------
# Fused kernel: (dense -> gelu -> LayerNorm) once per row tile, then one
# decoder output tile per grid step.
# ---------------------------------------------------------------------------
def fused_head_kernel(x_ref, wd_ref, bd_ref, g_ref, beta_ref,
                      wdec_ref, bdec_ref, o_ref, t_ref):
    j = pl.program_id(1)

    @pl.when(j == 0)
    def _():
        # dense: [tm, H] @ [H, H] (pre-transposed), f32 accumulation on MXU.
        h = jnp.dot(x_ref[...], wd_ref[...],
                    preferred_element_type=jnp.float32) + bd_ref[...]
        # gelu (erf formulation), f32.
        h = h * 0.5 * (1.0 + lax.erf(h * _INV_SQRT2))
        # LayerNorm over hidden axis (biased variance, eps=1e-12), f32.
        mean = jnp.mean(h, axis=-1, keepdims=True)
        var = jnp.mean(jnp.square(h - mean), axis=-1, keepdims=True)
        h = (h - mean) * lax.rsqrt(var + _LN_EPS)
        h = h * g_ref[...] + beta_ref[...]
        t_ref[...] = h.astype(t_ref.dtype)

    # decoder tile: [tm, H] @ [H, tn] + bias (transform reused from scratch).
    y = jnp.dot(t_ref[...], wdec_ref[...],
                preferred_element_type=jnp.float32) + bdec_ref[...]
    o_ref[...] = y.astype(o_ref.dtype)


# ---------------------------------------------------------------------------
# Wrapper
# ---------------------------------------------------------------------------
def bert_visual_obj_head(hidden_states, params, *, tm=256, tn=512,
                         compute_dtype=jnp.bfloat16):
    """hidden_states: [B, S, H] -> dict {key: [B, S, N_key]} (f32 logits)."""
    B, S, H = hidden_states.shape
    M = B * S
    x = hidden_states.reshape(M, H)

    keys = list(params["dec_w"].keys())
    widths = [int(params["dec_w"][k].shape[0]) for k in keys]
    offsets, off = [], 0
    for w in widths:
        offsets.append(off)
        off += w
    N = off

    # --- tile sizes: keep 8/128 alignment, clamp to the (padded) problem ---
    tm = min(_round_up(tm, 8), _round_up(M, 8))
    tn = min(_round_up(tn, 128), _round_up(N, 128))
    M_pad = _round_up(M, tm)
    N_pad = _round_up(N, tn)

    # --- operand prep: pad, pre-transpose, cast matmul operands to bf16 ---
    x_p = jnp.pad(x, ((0, M_pad - M), (0, 0))).astype(compute_dtype)
    wd_t = params["dense_w"].T.astype(compute_dtype)              # [H, H] (in, out)
    bd = params["dense_b"].reshape(1, H).astype(jnp.float32)
    gamma = params["ln_gamma"].reshape(1, H).astype(jnp.float32)
    beta = params["ln_beta"].reshape(1, H).astype(jnp.float32)

    w_cat = jnp.concatenate([params["dec_w"][k].T for k in keys], axis=1)   # [H, N]
    b_cat = jnp.concatenate([params["dec_b"][k] for k in keys], axis=0)     # [N]
    w_cat = jnp.pad(w_cat, ((0, 0), (0, N_pad - N))).astype(compute_dtype)
    b_cat = jnp.pad(b_cat, (0, N_pad - N)).reshape(1, N_pad).astype(jnp.float32)

    grid = (M_pad // tm, N_pad // tn)

    out = pl.pallas_call(
        fused_head_kernel,
        out_shape=jax.ShapeDtypeStruct((M_pad, N_pad), jnp.float32),
        grid_spec=pltpu.PrefetchScalarGridSpec(
            num_scalar_prefetch=0,
            grid=grid,
            in_specs=[
                # activations row tile (constant across j -> fetched once per i)
                pl.BlockSpec((tm, H), lambda i, j: (i, 0)),
                # invariant transform params: single resident VMEM copies
                pl.BlockSpec(memory_space=pltpu.MemorySpace.VMEM),   # dense W^T
                pl.BlockSpec(memory_space=pltpu.MemorySpace.VMEM),   # dense b
                pl.BlockSpec(memory_space=pltpu.MemorySpace.VMEM),   # LN gamma
                pl.BlockSpec(memory_space=pltpu.MemorySpace.VMEM),   # LN beta
                # concatenated decoder weight / bias tiles
                pl.BlockSpec((H, tn), lambda i, j: (0, j)),
                pl.BlockSpec((1, tn), lambda i, j: (0, j)),
            ],
            out_specs=pl.BlockSpec((tm, tn), lambda i, j: (i, j)),
            scratch_shapes=[pltpu.VMEM((tm, H), compute_dtype)],
        ),
        compiler_params=pltpu.CompilerParams(
            dimension_semantics=("parallel", "arbitrary"),
            vmem_limit_bytes=48 * 1024 * 1024),
    )(x_p, wd_t, bd, gamma, beta, w_cat, b_cat)

    out = out[:M]
    return {k: out[:, o:o + w].reshape(B, S, w)
            for k, o, w in zip(keys, offsets, widths)}


# ---------------------------------------------------------------------------
# Pure-JAX reference (f32) for correctness
# ---------------------------------------------------------------------------
def reference(hidden_states, params):
    h = hidden_states @ params["dense_w"].T + params["dense_b"]
    h = h * 0.5 * (1.0 + lax.erf(h * _INV_SQRT2))
    mean = jnp.mean(h, axis=-1, keepdims=True)
    var = jnp.mean(jnp.square(h - mean), axis=-1, keepdims=True)
    h = (h - mean) / jnp.sqrt(var + _LN_EPS)
    h = h * params["ln_gamma"] + params["ln_beta"]
    return {k: h @ params["dec_w"][k].T + params["dec_b"][k]
            for k in params["dec_w"]}


if __name__ == "__main__":
    B, S, H = 2, 8, 128
    # per-key decoder output dims (deliberately not multiples of 128 to
    # exercise the padded / cdiv grid path)
    visual_loss_config = {"obj": 150, "attr": 90, "feat": 300}

    key = jax.random.PRNGKey(0)
    k_x, k_dw, k_db, k_g, k_b, k_dec = jax.random.split(key, 6)

    hidden_states = jax.random.normal(k_x, (B, S, H), dtype=jnp.float32)

    dec_w, dec_b = {}, {}
    for i, (name, n_out) in enumerate(visual_loss_config.items()):
        kw, kb = jax.random.split(jax.random.fold_in(k_dec, i))
        dec_w[name] = jax.random.normal(kw, (n_out, H), dtype=jnp.float32) * 0.02
        dec_b[name] = jax.random.normal(kb, (n_out,), dtype=jnp.float32) * 0.02

    params = {
        # BertPredictionHeadTransform.dense : Linear(H, H), torch layout [out, in]
        "dense_w": jax.random.normal(k_dw, (H, H), dtype=jnp.float32) * 0.02,
        "dense_b": jax.random.normal(k_db, (H,), dtype=jnp.float32) * 0.02,
        # BertLayerNorm(H, eps=1e-12)
        "ln_gamma": 1.0 + 0.1 * jax.random.normal(k_g, (H,), dtype=jnp.float32),
        "ln_beta": 0.1 * jax.random.normal(k_b, (H,), dtype=jnp.float32),
        # decoder_dict: Linear(H, N_key) per visual loss, torch layout [out, in]
        "dec_w": dec_w,
        "dec_b": dec_b,
    }

    ref = reference(hidden_states, params)

    # Default bf16-MXU path (fast path; loosened tolerance vs f32 reference).
    out_bf16 = jax.block_until_ready(bert_visual_obj_head(hidden_states, params))
    # f32 compute path: verifies exact forward semantics tightly.
    out_f32 = jax.block_until_ready(
        bert_visual_obj_head(hidden_states, params, compute_dtype=jnp.float32))

    for name, n_out in visual_loss_config.items():
        assert out_bf16[name].shape == (B, S, n_out), (name, out_bf16[name].shape)
        err32 = float(jnp.max(jnp.abs(out_f32[name] - ref[name])))
        assert err32 < 1e-4, ("f32 path", name, err32)
        err16 = float(jnp.max(jnp.abs(out_bf16[name] - ref[name])))
        assert err16 < 3e-2, ("bf16 path", name, err16)

    print("KERNEL_OK")
</pallas_src>

<mosaic_0001>
module attributes {stable_mosaic.version = 11 : i64} {
  func.func @fused_head_kernel(%arg0: i32, %arg1: i32, %arg2: memref<16x128xbf16, #tpu.memory_space<vmem>>, %arg3: memref<128x128xbf16, #tpu.memory_space<vmem>>, %arg4: memref<1x128xf32, #tpu.memory_space<vmem>>, %arg5: memref<1x128xf32, #tpu.memory_space<vmem>>, %arg6: memref<1x128xf32, #tpu.memory_space<vmem>>, %arg7: memref<128x512xbf16, #tpu.memory_space<vmem>>, %arg8: memref<1x512xf32, #tpu.memory_space<vmem>>, %arg9: memref<16x512xf32, #tpu.memory_space<vmem>>, %arg10: memref<16x128xbf16, #tpu.memory_space<vmem>>) attributes {dimension_semantics = [#tpu.dimension_semantics<parallel>, #tpu.dimension_semantics<arbitrary>], iteration_bounds = array<i64: 1, 2>, scalar_prefetch = 0 : i64, scratch_operands = 1 : i64, tpu.core_type = #tpu.core_type<tc>, window_params = [{transform_indices = @transform_0, window_bounds = array<i64: 16, 128>}, {pipeline_mode = #tpu.pipeline_mode<synchronous>, transform_indices = @transform_1, window_bounds = array<i64: 128, 128>}, {pipeline_mode = #tpu.pipeline_mode<synchronous>, transform_indices = @transform_2, window_bounds = array<i64: 1, 128>}, {pipeline_mode = #tpu.pipeline_mode<synchronous>, transform_indices = @transform_3, window_bounds = array<i64: 1, 128>}, {pipeline_mode = #tpu.pipeline_mode<synchronous>, transform_indices = @transform_4, window_bounds = array<i64: 1, 128>}, {transform_indices = @transform_5, window_bounds = array<i64: 128, 512>}, {transform_indices = @transform_6, window_bounds = array<i64: 1, 512>}, {transform_indices = @transform_7, window_bounds = array<i64: 16, 512>}]} {
    %c0_i32 = arith.constant 0 : i32
    %0 = arith.cmpi eq, %arg1, %c0_i32 : i32
    %1 = arith.extui %0 : i1 to i32
    %c0_i32_0 = arith.constant 0 : i32
    %2 = arith.cmpi ne, %1, %c0_i32_0 : i32
    scf.if %2 {
      %c0_8 = arith.constant 0 : index
      %c0_9 = arith.constant 0 : index
      %10 = vector.load %arg2[%c0_8, %c0_9] : memref<16x128xbf16, #tpu.memory_space<vmem>>, vector<16x128xbf16>
      %c0_10 = arith.constant 0 : index
      %c0_11 = arith.constant 0 : index
      %11 = vector.load %arg3[%c0_10, %c0_11] : memref<128x128xbf16, #tpu.memory_space<vmem>>, vector<128x128xbf16>
      %cst_12 = arith.constant dense<0.000000e+00> : vector<16x128xf32>
      %12 = tpu.matmul %10, %11, %cst_12 {dimension_numbers = #tpu.dot_dimension_numbers<[1], [0], [0], [1], [0, 0, 1, 1], [], []>} : vector<16x128xbf16>, vector<128x128xbf16>, vector<16x128xf32> -> vector<16x128xf32>
      %c0_13 = arith.constant 0 : index
      %c0_14 = arith.constant 0 : index
      %13 = vector.load %arg4[%c0_13, %c0_14] : memref<1x128xf32, #tpu.memory_space<vmem>>, vector<1x128xf32>
      %14 = vector.broadcast %13 : vector<1x128xf32> to vector<16x128xf32>
      %15 = arith.addf %12, %14 : vector<16x128xf32>
      %cst_15 = arith.constant 5.000000e-01 : f32
      %16 = vector.broadcast %cst_15 : f32 to vector<16x128xf32>
      %17 = arith.mulf %15, %16 : vector<16x128xf32>
      %cst_16 = arith.constant 0.707106769 : f32
      %18 = vector.broadcast %cst_16 : f32 to vector<16x128xf32>
      %19 = arith.mulf %15, %18 : vector<16x128xf32>
      %20 = math.erf %19 : vector<16x128xf32>
      %cst_17 = arith.constant 1.000000e+00 : f32
      %21 = vector.broadcast %cst_17 : f32 to vector<16x128xf32>
      %22 = arith.addf %21, %20 : vector<16x128xf32>
      %23 = arith.mulf %17, %22 : vector<16x128xf32>
      %cst_18 = arith.constant dense<0.000000e+00> : vector<16xf32>
      %24 = vector.multi_reduction <add>, %23, %cst_18 [1] : vector<16x128xf32> to vector<16xf32>
      %25 = vector.shape_cast %24 : vector<16xf32> to vector<16x1xf32>
      %cst_19 = arith.constant 1.280000e+02 : f32
      %26 = vector.broadcast %cst_19 : f32 to vector<16x1xf32>
      %27 = arith.divf %25, %26 : vector<16x1xf32>
      %28 = vector.broadcast %27 : vector<16x1xf32> to vector<16x128xf32>
      %29 = arith.subf %23, %28 : vector<16x128xf32>
      %30 = arith.mulf %29, %29 : vector<16x128xf32>
      %cst_20 = arith.constant dense<0.000000e+00> : vector<16xf32>
      %31 = vector.multi_reduction <add>, %30, %cst_20 [1] : vector<16x128xf32> to vector<16xf32>
      %32 = vector.shape_cast %31 : vector<16xf32> to vector<16x1xf32>
      %cst_21 = arith.constant 1.280000e+02 : f32
      %33 = vector.broadcast %cst_21 : f32 to vector<16x1xf32>
      %34 = arith.divf %32, %33 : vector<16x1xf32>
      %35 = vector.broadcast %27 : vector<16x1xf32> to vector<16x128xf32>
      %36 = arith.subf %23, %35 : vector<16x128xf32>
      %cst_22 = arith.constant 9.99999996E-13 : f32
      %37 = vector.broadcast %cst_22 : f32 to vector<16x1xf32>
      %38 = arith.addf %34, %37 : vector<16x1xf32>
      %39 = math.rsqrt %38 : vector<16x1xf32>
      %40 = vector.broadcast %39 : vector<16x1xf32> to vector<16x128xf32>
      %41 = arith.mulf %36, %40 : vector<16x128xf32>
      %c0_23 = arith.constant 0 : index
      %c0_24 = arith.constant 0 : index
      %42 = vector.load %arg5[%c0_23, %c0_24] : memref<1x128xf32, #tpu.memory_space<vmem>>, vector<1x128xf32>
      %43 = vector.broadcast %42 : vector<1x128xf32> to vector<16x128xf32>
      %44 = arith.mulf %41, %43 : vector<16x128xf32>
      %c0_25 = arith.constant 0 : index
      %c0_26 = arith.constant 0 : index
      %45 = vector.load %arg6[%c0_25, %c0_26] : memref<1x128xf32, #tpu.memory_space<vmem>>, vector<1x128xf32>
      %46 = vector.broadcast %45 : vector<1x128xf32> to vector<16x128xf32>
      %47 = arith.addf %44, %46 : vector<16x128xf32>
      %48 = arith.truncf %47 : vector<16x128xf32> to vector<16x128xbf16>
      %c0_27 = arith.constant 0 : index
      %c0_28 = arith.constant 0 : index
      %49 = vector.load %arg10[%c0_27, %c0_28] : memref<16x128xbf16, #tpu.memory_space<vmem>>, vector<16x128xbf16>
      tpu.vector_store %arg10[%c0_27, %c0_28], %48 {strides = array<i32>} : memref<16x128xbf16, #tpu.memory_space<vmem>>, vector<16x128xbf16>,
    } else {
    }
    %c0 = arith.constant 0 : index
    %c0_1 = arith.constant 0 : index
    %3 = vector.load %arg10[%c0, %c0_1] : memref<16x128xbf16, #tpu.memory_space<vmem>>, vector<16x128xbf16>
    %c0_2 = arith.constant 0 : index
    %c0_3 = arith.constant 0 : index
    %4 = vector.load %arg7[%c0_2, %c0_3] : memref<128x512xbf16, #tpu.memory_space<vmem>>, vector<128x512xbf16>
    %cst = arith.constant dense<0.000000e+00> : vector<16x512xf32>
    %5 = tpu.matmul %3, %4, %cst {dimension_numbers = #tpu.dot_dimension_numbers<[1], [0], [0], [1], [0, 0, 1, 1], [], []>} : vector<16x128xbf16>, vector<128x512xbf16>, vector<16x512xf32> -> vector<16x512xf32>
    %c0_4 = arith.constant 0 : index
    %c0_5 = arith.constant 0 : index
    %6 = vector.load %arg8[%c0_4, %c0_5] : memref<1x512xf32, #tpu.memory_space<vmem>>, vector<1x512xf32>
    %7 = vector.broadcast %6 : vector<1x512xf32> to vector<16x512xf32>
    %8 = arith.addf %5, %7 : vector<16x512xf32>
    %c0_6 = arith.constant 0 : index
    %c0_7 = arith.constant 0 : index
    %9 = vector.load %arg9[%c0_6, %c0_7] : memref<16x512xf32, #tpu.memory_space<vmem>>, vector<16x512xf32>
    tpu.vector_store %arg9[%c0_6, %c0_7], %8 {strides = array<i32>} : memref<16x512xf32, #tpu.memory_space<vmem>>, vector<16x512xf32>,
    return
  }
  func.func @transform_0(%arg0: i32, %arg1: i32) -> (i32, i32) {
    %c0_i32 = arith.constant 0 : i32
    %c0_i32_0 = arith.constant 0 : i32
    return %arg0, %c0_i32 : i32, i32
  }
  func.func @transform_1(%arg0: i32, %arg1: i32) -> (i32, i32) {
    %c0_i32 = arith.constant 0 : i32
    %c0_i32_0 = arith.constant 0 : i32
    %c0_i32_1 = arith.constant 0 : i32
    return %c0_i32, %c0_i32_0 : i32, i32
  }
  func.func @transform_2(%arg0: i32, %arg1: i32) -> (i32, i32) {
    %c0_i32 = arith.constant 0 : i32
    %c0_i32_0 = arith.constant 0 : i32
    %c0_i32_1 = arith.constant 0 : i32
    return %c0_i32, %c0_i32_0 : i32, i32
  }
  func.func @transform_3(%arg0: i32, %arg1: i32) -> (i32, i32) {
    %c0_i32 = arith.constant 0 : i32
    %c0_i32_0 = arith.constant 0 : i32
    %c0_i32_1 = arith.constant 0 : i32
    return %c0_i32, %c0_i32_0 : i32, i32
  }
  func.func @transform_4(%arg0: i32, %arg1: i32) -> (i32, i32) {
    %c0_i32 = arith.constant 0 : i32
    %c0_i32_0 = arith.constant 0 : i32
    %c0_i32_1 = arith.constant 0 : i32
    return %c0_i32, %c0_i32_0 : i32, i32
  }
  func.func @transform_5(%arg0: i32, %arg1: i32) -> (i32, i32) {
    %c0_i32 = arith.constant 0 : i32
    %c0_i32_0 = arith.constant 0 : i32
    return %c0_i32, %arg1 : i32, i32
  }
  func.func @transform_6(%arg0: i32, %arg1: i32) -> (i32, i32) {
    %c0_i32 = arith.constant 0 : i32
    %c0_i32_0 = arith.constant 0 : i32
    return %c0_i32, %arg1 : i32, i32
  }
  func.func @transform_7(%arg0: i32, %arg1: i32) -> (i32, i32) {
    %c0_i32 = arith.constant 0 : i32
    return %arg0, %arg1 : i32, i32
  }
}

</mosaic_0001>

<llo_original>
// kernel: tpu_custom_call.1
$region0: #{tpu_custom_call.1}
  #allocation0 [shape = 'u32[]', space=smem, size = 0x4, offset = 0x4, fixed_abs, tag = 'smem constant byte address 0x4 - core index']
  #allocation1 [shape = 'u32[144,128]{1,0:T(1,128)}', space=vmem, size = 0x12000, scoped, tag = 'internal scratch']
  #allocation2 [shape = 'bf16[16,128]{1,0:T(8,128)(2,1)}', space=vmem, size = 0x1000, scoped, tag = 'scratch operand']
  %s0 = inlined_call_operand.hbm [shape: bf16[16,128], index: 0, kind: input, shape index: {}]
  %s1 = inlined_call_operand.hbm [shape: bf16[128,128], index: 1, kind: input, shape index: {}]
  %s2 = inlined_call_operand.vmem [shape: f32[1,128], index: 2, kind: input, shape index: {}]
  %s3 = inlined_call_operand.vmem [shape: f32[1,128], index: 3, kind: input, shape index: {}]
  %s4 = inlined_call_operand.hbm [shape: f32[1,128], index: 4, kind: input, shape index: {}]
  %s5 = inlined_call_operand.hbm [shape: bf16[128,1024], index: 5, kind: input, shape index: {}]
  %s6 = inlined_call_operand.vmem [shape: f32[1,1024], index: 6, kind: input, shape index: {}]
  %s7 = inlined_call_operand.hbm [shape: f32[16,1024], index: 7, kind: output, shape index: {}]
  %s8 = sld [smem:[#allocation0]]
  $region81: #{tpu_custom_call.1} parent=0
    _
  %s10 = ssub.s32 1, %s8
  %s11 = scalar_select 0, %s10, %s8
  $region1: #{tpu_custom_call.1} parent=0
    #allocation3 [shape = 'u8[4096]{0}', space=vmem, size = 0x1000, scoped, tag = 'input window, operand 0, single buffered']
    #allocation4 [shape = 's32[2]{0}', space=sflag, size = 0x8, scoped, tag = 'scoped memory for tpu_custom_call.1']
    #allocation5 [shape = 's32[2]{0}', space=sflag, size = 0x8, scoped, tag = 'scoped memory for tpu_custom_call.1']
    #allocation6 [shape = 'u8[32768]{0}', space=vmem, size = 0x8000, scoped, tag = 'input window, operand 1, single buffered']
    #allocation7 [shape = 's32[1]{0}', space=sflag, size = 0x4, scoped, tag = 'scoped memory for tpu_custom_call.1']
    #allocation8 [shape = 'u8[512]{0}', space=vmem, size = 0x400, scoped, tag = 'input window, operand 4, single buffered']
    #allocation9 [shape = 'u8[262144]{0}', space=vmem, size = 0x40000, scoped, tag = 'input window, operand 5']
    #allocation10 [shape = 's32[2]{0}', space=sflag, size = 0x8, scoped, tag = 'scoped memory for tpu_custom_call.1']
    #allocation11 [shape = 'u8[65536]{0}', space=vmem, size = 0x10000, scoped, tag = 'output window, operand 0']
    %12 = vsyncpa [#allocation4], 0
    %13 = vsyncpa [#allocation7], 0
    %14 = vsyncpa [#allocation10], 0
    %s15 = scalar_lea.sflag [#allocation10], 1
    %16 = vsyncpa %s15, 0
    %17 = vsyncpa [#allocation5], 0
    %s18 = scalar_lea.sflag [#allocation5], 1
    %19 = vsyncpa %s18, 0
    loop: start=0, step=1, limit=4
    $region2: #{tpu_custom_call.1} parent=1 // loop_pre_header
      _
    $region3: #{tpu_custom_call.1} parent=1 // loop_header
      %s21 = sphi 0, %s25
      %p22 = scmp.ge.s32.totalorder %s21, 4
      %s28 = sphi 0, %s40
      %s29 = sphi 0, %s36
      %s30 = sphi 0, %s28
      %s31 = sphi 0, %s29
      %s32 = sphi 0, %s30
      %s33 = sphi 0, %s31
      %s43 = sphi 0, %s45
      %s46 = sphi 0, %s43
      %s47 = sphi 0, %s46
      %s63 = sphi 0, %s47
      %s67 = sphi 0, %s67
      %s69 = sphi 0, %s67
      %s70 = sphi 0, %s69
      %s84 = sphi 0, %s70
      %s88 = sphi 0, %s88
      %s90 = sphi 0, %s88
      %s91 = sphi 0, %s90
      %s105 = sphi 0, %s91
      %s109 = sphi 0, %s109
      %s111 = sphi 0, %s109
      %s112 = sphi 0, %s111
      %s126 = sphi 0, %s112
      %s130 = sphi 0, %s130
      %s132 = sphi 0, %s130
      %s133 = sphi 0, %s132
      %s147 = sphi 0, %s133
      %s153 = sphi 0, %s155
      %s156 = sphi 0, %s153
      %s157 = sphi 0, %s156
      %s173 = sphi 0, %s157
      %s179 = sphi 0, %s181
      %s182 = sphi 0, %s179
      %s183 = sphi 0, %s182
      %s199 = sphi 0, %s183
      %s207 = sphi 0, %s209
      %s210 = sphi 0, %s207
      %s211 = sphi 0, %s210
      %s227 = sphi 0, %s211
    $region4: #{tpu_custom_call.1} parent=1 // loop_header_branch
      %24 = sbr.rel (%p22) target = $region8
    $region5: #{tpu_custom_call.1} parent=1 // loop_body
      %s26 = ssub.s32 %s21, 1
      %s27 = ssub.s32 %s21, 2
      %s34 = sadd.s32 1, %s29
      %p35 = scmp.ge.s32.totalorder %s34, 2
      %s36 = scalar_select %p35, 0, %s34
      %s37 = sadd.s32 1, %s28
      %s38 = scalar_select %p35, %s37, %s28
      %p39 = scmp.ge.s32.totalorder %s38, 1
      %s40 = scalar_select %p39, 0, %s38
      %s41 = ssub.s32 %s28, %s40
      %p42 = scmp.eq.s32.totalorder %s41, 0
      %s44 = sadd.s32 %s43, 1
      %s45 = scalar_select %p42, %s43, %s44
      %p48 = pneg %p42
      %p49 = scmp.eq.s32.totalorder %s21, 1
      %p50 = por %p48, %p49
      %p51 = scmp.ne.s32.totalorder %s43, %s46
      %p52 = scmp.eq.s32.totalorder %s21, 0
      %p53 = por %p51, %p52
      %p54 = scmp.ne.s32.totalorder %s43, %s46
      %p55 = scmp.eq.s32.totalorder %s26, 1
      %p56 = por %p54, %p55
      %p57 = scmp.ne.s32.totalorder %s46, %s47
      %p58 = scmp.eq.s32.totalorder %s26, 0
      %p59 = por %p57, %p58
      %p60 = scmp.ne.s32.totalorder %s46, %s47
      %p61 = scmp.eq.s32.totalorder %s27, 1
      %p62 = por %p60, %p61
      %p64 = scmp.ne.s32.totalorder %s47, %s63
      %p65 = scmp.eq.s32.totalorder %s27, 0
      %p66 = por %p64, %p65
      %s68 = sadd.s32 %s67, 1
      %p71 = scmp.eq.s32.totalorder %s21, 1
      %p72 = scmp.ne.s32.totalorder %s67, %s69
      %p73 = scmp.eq.s32.totalorder %s21, 0
      %p74 = por %p72, %p73
      %p75 = scmp.ne.s32.totalorder %s67, %s69
      %p76 = scmp.eq.s32.totalorder %s26, 1
      %p77 = por %p75, %p76
      %p78 = scmp.ne.s32.totalorder %s69, %s70
      %p79 = scmp.eq.s32.totalorder %s26, 0
      %p80 = por %p78, %p79
      %p81 = scmp.ne.s32.totalorder %s69, %s70
      %p82 = scmp.eq.s32.totalorder %s27, 1
      %p83 = por %p81, %p82
      %p85 = scmp.ne.s32.totalorder %s70, %s84
      %p86 = scmp.eq.s32.totalorder %s27, 0
      %p87 = por %p85, %p86
      %s89 = sadd.s32 %s88, 1
      %p92 = scmp.eq.s32.totalorder %s21, 1
      %p93 = scmp.ne.s32.totalorder %s88, %s90
      %p94 = scmp.eq.s32.totalorder %s21, 0
      %p95 = por %p93, %p94
      %p96 = scmp.ne.s32.totalorder %s88, %s90
      %p97 = scmp.eq.s32.totalorder %s26, 1
      %p98 = por %p96, %p97
      %p99 = scmp.ne.s32.totalorder %s90, %s91
      %p100 = scmp.eq.s32.totalorder %s26, 0
      %p101 = por %p99, %p100
      %p102 = scmp.ne.s32.totalorder %s90, %s91
      %p103 = scmp.eq.s32.totalorder %s27, 1
      %p104 = por %p102, %p103
      %p106 = scmp.ne.s32.totalorder %s91, %s105
      %p107 = scmp.eq.s32.totalorder %s27, 0
      %p108 = por %p106, %p107
      %s110 = sadd.s32 %s109, 1
      %p113 = scmp.eq.s32.totalorder %s21, 1
      %p114 = scmp.ne.s32.totalorder %s109, %s111
      %p115 = scmp.eq.s32.totalorder %s21, 0
      %p116 = por %p114, %p115
      %p117 = scmp.ne.s32.totalorder %s109, %s111
      %p118 = scmp.eq.s32.totalorder %s26, 1
      %p119 = por %p117, %p118
      %p120 = scmp.ne.s32.totalorder %s111, %s112
      %p121 = scmp.eq.s32.totalorder %s26, 0
      %p122 = por %p120, %p121
      %p123 = scmp.ne.s32.totalorder %s111, %s112
      %p124 = scmp.eq.s32.totalorder %s27, 1
      %p125 = por %p123, %p124
      %p127 = scmp.ne.s32.totalorder %s112, %s126
      %p128 = scmp.eq.s32.totalorder %s27, 0
      %p129 = por %p127, %p128
      %s131 = sadd.s32 %s130, 1
      %p134 = scmp.eq.s32.totalorder %s21, 1
      %p135 = scmp.ne.s32.totalorder %s130, %s132
      %p136 = scmp.eq.s32.totalorder %s21, 0
      %p137 = por %p135, %p136
      %p138 = scmp.ne.s32.totalorder %s130, %s132
      %p139 = scmp.eq.s32.totalorder %s26, 1
      %p140 = por %p138, %p139
      %p141 = scmp.ne.s32.totalorder %s132, %s133
      %p142 = scmp.eq.s32.totalorder %s26, 0
      %p143 = por %p141, %p142
      %p144 = scmp.ne.s32.totalorder %s132, %s133
      %p145 = scmp.eq.s32.totalorder %s27, 1
      %p146 = por %p144, %p145
      %p148 = scmp.ne.s32.totalorder %s133, %s147
      %p149 = scmp.eq.s32.totalorder %s27, 0
      %p150 = por %p148, %p149
      %s151 = ssub.s32 %s29, %s36
      %p152 = scmp.eq.s32.totalorder %s151, 0
      %s154 = sadd.s32 %s153, 1
      %s155 = scalar_select %p152, %s153, %s154
      %p158 = pneg %p152
      %p159 = scmp.eq.s32.totalorder %s21, 1
      %p160 = por %p158, %p159
      %p161 = scmp.ne.s32.totalorder %s153, %s156
      %p162 = scmp.eq.s32.totalorder %s21, 0
      %p163 = por %p161, %p162
      %p164 = scmp.ne.s32.totalorder %s153, %s156
      %p165 = scmp.eq.s32.totalorder %s26, 1
      %p166 = por %p164, %p165
      %p167 = scmp.ne.s32.totalorder %s156, %s157
      %p168 = scmp.eq.s32.totalorder %s26, 0
      %p169 = por %p167, %p168
      %p170 = scmp.ne.s32.totalorder %s156, %s157
      %p171 = scmp.eq.s32.totalorder %s27, 1
      %p172 = por %p170, %p171
      %p174 = scmp.ne.s32.totalorder %s157, %s173
      %p175 = scmp.eq.s32.totalorder %s27, 0
      %p176 = por %p174, %p175
      %s177 = ssub.s32 %s29, %s36
      %p178 = scmp.eq.s32.totalorder %s177, 0
      %s180 = sadd.s32 %s179, 1
      %s181 = scalar_select %p178, %s179, %s180
      %p184 = pneg %p178
      %p185 = scmp.eq.s32.totalorder %s21, 1
      %p186 = por %p184, %p185
      %p187 = scmp.ne.s32.totalorder %s179, %s182
      %p188 = scmp.eq.s32.totalorder %s21, 0
      %p189 = por %p187, %p188
      %p190 = scmp.ne.s32.totalorder %s179, %s182
      %p191 = scmp.eq.s32.totalorder %s26, 1
      %p192 = por %p190, %p191
      %p193 = scmp.ne.s32.totalorder %s182, %s183
      %p194 = scmp.eq.s32.totalorder %s26, 0
      %p195 = por %p193, %p194
      %p196 = scmp.ne.s32.totalorder %s182, %s183
      %p197 = scmp.eq.s32.totalorder %s27, 1
      %p198 = por %p196, %p197
      %p200 = scmp.ne.s32.totalorder %s183, %s199
      %p201 = scmp.eq.s32.totalorder %s27, 0
      %p202 = por %p200, %p201
      %s203 = ssub.s32 %s28, %s40
      %s204 = ssub.s32 %s29, %s36
      %s205 = sor.u32 %s203, %s204
      %p206 = scmp.eq.s32.totalorder %s205, 0
      %s208 = sadd.s32 %s207, 1
      %s209 = scalar_select %p206, %s207, %s208
      %p212 = pneg %p206
      %p213 = scmp.eq.s32.totalorder %s21, 1
      %p214 = por %p212, %p213
      %p215 = scmp.ne.s32.totalorder %s207, %s210
      %p216 = scmp.eq.s32.totalorder %s21, 0
      %p217 = por %p215, %p216
      %p218 = scmp.ne.s32.totalorder %s207, %s210
      %p219 = scmp.eq.s32.totalorder %s26, 1
      %p220 = por %p218, %p219
      %p221 = scmp.ne.s32.totalorder %s210, %s211
      %p222 = scmp.eq.s32.totalorder %s26, 0
      %p223 = por %p221, %p222
      %p224 = scmp.ne.s32.totalorder %s210, %s211
      %p225 = scmp.eq.s32.totalorder %s27, 1
      %p226 = por %p224, %p225
      %p228 = scmp.ne.s32.totalorder %s211, %s227
      %p229 = scmp.eq.s32.totalorder %s27, 0
      %p230 = por %p228, %p229
      %p231 = scmp.le.s32.totalorder 1, %s21
      %p232 = scmp.lt.s32.totalorder %s21, 3
      %p233 = pnand %p231, %p232
      %p234 = pneg %p233
      // Predicated region
      $region9: #{tpu_custom_call.1} parent=5 // pred_check
        _
      $region10: #{tpu_custom_call.1} parent=5 // pred_check_branch
        %236 = sbr.rel (%p233) target = $region12
      $region11: #{tpu_custom_call.1} parent=5 // pred_region
        %s237 = ssub.s32 %s21, 1
        // Predicated region
        $region13: #{tpu_custom_call.1} parent=11 // pred_check
          %p238 = pneg %p59
        $region14: #{tpu_custom_call.1} parent=11 // pred_check_branch
          %240 = sbr.rel (%p238) target = $region16
        $region15: #{tpu_custom_call.1} parent=11 // pred_region
          %s241 = smul.u32 2, %s30
          %s243 = ssub.s32 128, 128
          %244 = vsyncadd [#allocation4], %s243
          %s245 = smul.addr %s241, 64
          %s246 = scalar_lea.hbm %s0, %s245
          %s247 = sshll.u32 [#allocation3], 4
          %s248 = int_to_ptr.vmem [resolvable:$true] %s247
          %253 = dma.hbm_to_vmem [thread:$0]  %s246, 128, %s248, [#allocation4], 64, 64, 4
        $region16: #{tpu_custom_call.1} parent=11 // pred_fallthru
          _
        // Predicated region
        $region17: #{tpu_custom_call.1} parent=11 // pred_check
          %p254 = pneg %p80
        $region18: #{tpu_custom_call.1} parent=11 // pred_check_branch
          %256 = sbr.rel (%p254) target = $region20
        $region19: #{tpu_custom_call.1} parent=11 // pred_region
          %s258 = ssub.s32 1024, 1024
          %259 = vsyncadd [#allocation7], %s258
          %s260 = sshll.u32 [#allocation6], 4
          %s261 = int_to_ptr.vmem [resolvable:$true] %s260
          %266 = dma.hbm_to_vmem [thread:$0]  %s1, 1024, %s261, [#allocation7], 64, 64, 4
        $region20: #{tpu_custom_call.1} parent=11 // pred_fallthru
          _
        // Predicated region
        $region21: #{tpu_custom_call.1} parent=11 // pred_check
          %p267 = pneg %p101
        $region22: #{tpu_custom_call.1} parent=11 // pred_check_branch
          %269 = sbr.rel (%p267) target = $region24
        $region23: #{tpu_custom_call.1} parent=11 // pred_region
          _
        $region24: #{tpu_custom_call.1} parent=11 // pred_fallthru
          _
        // Predicated region
        $region25: #{tpu_custom_call.1} parent=11 // pred_check
          %p270 = pneg %p122
        $region26: #{tpu_custom_call.1} parent=11 // pred_check_branch
          %272 = sbr.rel (%p270) target = $region28
        $region27: #{tpu_custom_call.1} parent=11 // pred_region
          _
        $region28: #{tpu_custom_call.1} parent=11 // pred_fallthru
          _
        // Predicated region
        $region29: #{tpu_custom_call.1} parent=11 // pred_check
          %p273 = pneg %p143
        $region30: #{tpu_custom_call.1} parent=11 // pred_check_branch
          %275 = sbr.rel (%p273) target = $region32
        $region31: #{tpu_custom_call.1} parent=11 // pred_region
          %s277 = ssub.s32 16, 16
          %278 = vsyncadd [#allocation7], %s277
          %s280 = sshll.u32 [#allocation8], 4
          %s281 = int_to_ptr.vmem [resolvable:$true] %s280
          %283 = dma.hbm_to_vmem [thread:$0]  %s4, 16, %s281, [#allocation7]
        $region32: #{tpu_custom_call.1} parent=11 // pred_fallthru
          _
      $region12: #{tpu_custom_call.1} parent=5 // pred_fallthru
        _
      %p284 = scmp.lt.s32.totalorder %s21, 2
      // Predicated region
      $region33: #{tpu_custom_call.1} parent=5 // pred_check
        %p285 = pneg %p284
      $region34: #{tpu_custom_call.1} parent=5 // pred_check_branch
        %287 = sbr.rel (%p285) target = $region36
      $region35: #{tpu_custom_call.1} parent=5 // pred_region
        // Predicated region
        $region37: #{tpu_custom_call.1} parent=35 // pred_check
          %p288 = pneg %p163
        $region38: #{tpu_custom_call.1} parent=35 // pred_check_branch
          %290 = sbr.rel (%p288) target = $region40
        $region39: #{tpu_custom_call.1} parent=35 // pred_region
          %s291 = sand.u32 %s153, 1
          %s292 = scalar_lea.sflag [#allocation10], %s291
          %s293 = sand.u32 %s153, 1
          %s294 = smul.addr %s293, 256
          %s295 = scalar_lea.vmem [#allocation9], %s294
          %s296 = smul.u32 4, %s29
          %s298 = ssub.s32 4096, 4096
          %299 = vsyncadd %s292, %s298
          %s300 = smul.addr %s296, 64
          %s301 = scalar_lea.hbm %s5, %s300
          %s302 = sshll.u32 %s295, 4
          %s303 = int_to_ptr.vmem [resolvable:$true] %s302
          %308 = dma.hbm_to_vmem [thread:$0]  %s301, 4096, %s303, %s292, 512, 256, 16
        $region40: #{tpu_custom_call.1} parent=35 // pred_fallthru
          _
        // Predicated region
        $region41: #{tpu_custom_call.1} parent=35 // pred_check
          %p309 = pneg %p189
        $region42: #{tpu_custom_call.1} parent=35 // pred_check_branch
          %311 = sbr.rel (%p309) target = $region44
        $region43: #{tpu_custom_call.1} parent=35 // pred_region
          %s312 = smul.u32 4, %s29
          %p313 = scmp.lt.s32.totalorder %s312, 7
          %s314 = scalar_select %p313, %s312, 7
          %s315 = scalar_lea.vmem %s6, %s314
          %s316 = smul.u32 4, %s29
        $region44: #{tpu_custom_call.1} parent=35 // pred_fallthru
          _
      $region36: #{tpu_custom_call.1} parent=5 // pred_fallthru
        _
      %p317 = scmp.le.s32.totalorder 1, %s21
      %p318 = scmp.lt.s32.totalorder %s21, 3
      %p319 = pnand %p317, %p318
      %p320 = pneg %p319
      // Predicated region
      $region45: #{tpu_custom_call.1} parent=5 // pred_check
        _
      $region46: #{tpu_custom_call.1} parent=5 // pred_check_branch
        %322 = sbr.rel (%p319) target = $region48
      $region47: #{tpu_custom_call.1} parent=5 // pred_region
        %s323 = ssub.s32 %s21, 1
        // Predicated region
        $region49: #{tpu_custom_call.1} parent=47 // pred_check
          %p324 = pneg %p59
        $region50: #{tpu_custom_call.1} parent=47 // pred_check_branch
          %326 = sbr.rel (%p324) target = $region52
        $region51: #{tpu_custom_call.1} parent=47 // pred_region
          %327 = dma.done [#allocation4], 128
        $region52: #{tpu_custom_call.1} parent=47 // pred_fallthru
          _
        // Predicated region
        $region53: #{tpu_custom_call.1} parent=47 // pred_check
          %p328 = pneg %p80
        $region54: #{tpu_custom_call.1} parent=47 // pred_check_branch
          %330 = sbr.rel (%p328) target = $region56
        $region55: #{tpu_custom_call.1} parent=47 // pred_region
          %331 = dma.done [#allocation7], 1024
        $region56: #{tpu_custom_call.1} parent=47 // pred_fallthru
          _
        // Predicated region
        $region57: #{tpu_custom_call.1} parent=47 // pred_check
          %p332 = pneg %p143
        $region58: #{tpu_custom_call.1} parent=47 // pred_check_branch
          %334 = sbr.rel (%p332) target = $region60
        $region59: #{tpu_custom_call.1} parent=47 // pred_region
          %335 = dma.done [#allocation7], 16
        $region60: #{tpu_custom_call.1} parent=47 // pred_fallthru
          _
        %s336 = sand.u32 %s156, 1
        %s337 = scalar_lea.sflag [#allocation10], %s336
        %s338 = sand.u32 %s156, 1
        %s339 = smul.addr %s338, 256
        %s340 = scalar_lea.vmem [#allocation9], %s339
        // Predicated region
        $region61: #{tpu_custom_call.1} parent=47 // pred_check
          %p341 = pneg %p169
        $region62: #{tpu_custom_call.1} parent=47 // pred_check_branch
          %343 = sbr.rel (%p341) target = $region64
        $region63: #{tpu_custom_call.1} parent=47 // pred_region
          %344 = dma.done %s337, 4096
        $region64: #{tpu_custom_call.1} parent=47 // pred_fallthru
          _
        %p345 = pneg %p59
        %p346 = pneg %p56
        %p347 = pneg %p80
        %p348 = pneg %p77
        %p349 = pneg %p101
        %p350 = pneg %p98
        %p351 = pneg %p122
        %p352 = pneg %p119
        %p353 = pneg %p143
        %p354 = pneg %p140
        %s355 = sand.u32 %s156, 1
        %s356 = scalar_lea.sflag [#allocation10], %s355
        %s357 = sand.u32 %s156, 1
        %s358 = smul.addr %s357, 256
        %s359 = scalar_lea.vmem [#allocation9], %s358
        %p360 = pneg %p169
        %p361 = pneg %p166
        %s362 = smul.u32 4, %s31
        %p363 = scmp.lt.s32.totalorder %s362, 7
        %s364 = scalar_select %p363, %s362, 7
        %s365 = scalar_lea.vmem %s6, %s364
        %p366 = pneg %p195
        %p367 = pneg %p192
        %p368 = pneg %p223
        %p369 = pneg %p220
        %s370 = sand.u32 %s210, 1
        %s371 = scalar_lea.sflag [#allocation5], %s370
        %s372 = sand.u32 %s210, 1
        %s373 = smul.addr %s372, 64
        %s374 = scalar_lea.vmem [#allocation11], %s373
        %s375 = smul.u32 2, %s30
        %s376 = smul.u32 4, %s31
        %s377 = smul.u32 4, %s31
        %p378 = scmp.lt.s32.totalorder %s377, 7
        %s379 = scalar_select %p378, %s377, 7
        %s380 = scalar_lea.vmem %s6, %s379
        %s381 = smul.u32 4, %s31
        %s382 = smul.u32 2, %s30
        %s383 = smul.u32 4, %s31
        %p385 = scmp.eq.s32.totalorder %s31, 0
        // Predicated region
        $region65: #{tpu_custom_call.1} parent=47 // pred_check
          %p386 = pneg %p385
        $region66: #{tpu_custom_call.1} parent=47 // pred_check_branch
          %388 = sbr.rel (%p386) target = $region68
        $region67: #{tpu_custom_call.1} parent=47 // pred_region
          %v389 = vld [vmem:[#allocation3] sm:$0xf]
          %v390 = vld [vmem:[#allocation3 + $0x4] sm:$0xf]
          %v391 = vld [vmem:[#allocation6] sm:$0xf]
          %v392 = vld [vmem:[#allocation6 + $0x4] sm:$0xf]
          %v393 = vld [vmem:[#allocation6 + $0x8] sm:$0xf]
          %v394 = vld [vmem:[#allocation6 + $0xc] sm:$0xf]
          %v395 = vld [vmem:[#allocation6 + $0x10] sm:$0xf]
          %v396 = vld [vmem:[#allocation6 + $0x14] sm:$0xf]
          %v397 = vld [vmem:[#allocation6 + $0x18] sm:$0xf]
          %v398 = vld [vmem:[#allocation6 + $0x1c] sm:$0xf]
          %v399 = vld [vmem:[#allocation6 + $0x20] sm:$0xf]
          %v400 = vld [vmem:[#allocation6 + $0x24] sm:$0xf]
          %v401 = vld [vmem:[#allocation6 + $0x28] sm:$0xf]
          %v402 = vld [vmem:[#allocation6 + $0x2c] sm:$0xf]
          %v403 = vld [vmem:[#allocation6 + $0x30] sm:$0xf]
          %v404 = vld [vmem:[#allocation6 + $0x34] sm:$0xf]
          %v405 = vld [vmem:[#allocation6 + $0x38] sm:$0xf]
          %v406 = vld [vmem:[#allocation6 + $0x3c] sm:$0xf]
          %v407 = vld [vmem:[%s2] sm:$0x1]
          %v409 = vlaneseq
          %v410 = vshrl.u32 %v409, 7
          %v411 = vsub.s32 0, %v410
          %v412 = vrot.slane %v407, %v411
          %v416 = vunpack.c.l.b16 %v389
          %v417 = vunpack.c.l.b16 %v390
          %v418 = vpack.c.b16 %v417, %v416
          %v436 = vunpack.c.l.b16 %v391
          %v437 = vunpack.c.l.b16 %v392
          %v438 = vunpack.c.l.b16 %v393
          %v439 = vunpack.c.l.b16 %v394
          %v440 = vunpack.c.l.b16 %v395
          %v441 = vunpack.c.l.b16 %v396
          %v442 = vunpack.c.l.b16 %v397
          %v443 = vunpack.c.l.b16 %v398
          %v444 = vunpack.c.l.b16 %v399
          %v445 = vunpack.c.l.b16 %v400
          %v446 = vunpack.c.l.b16 %v401
          %v447 = vunpack.c.l.b16 %v402
          %v448 = vunpack.c.l.b16 %v403
          %v449 = vunpack.c.l.b16 %v404
          %v450 = vunpack.c.l.b16 %v405
          %v451 = vunpack.c.l.b16 %v406
          %v452 = vpack.c.b16 %v437, %v436
          %v453 = vpack.c.b16 %v439, %v438
          %v454 = vpack.c.b16 %v441, %v440
          %v455 = vpack.c.b16 %v443, %v442
          %v456 = vpack.c.b16 %v445, %v444
          %v457 = vpack.c.b16 %v447, %v446
          %v458 = vpack.c.b16 %v449, %v448
          %v459 = vpack.c.b16 %v451, %v450
          %468 = vmatprep.subr.bf16.mxu0 0
          %469 = vmatpush1.bf16.msra.mxu0 %v459
          %470 = vmatprep.subr.bf16.mxu0 0
          %471 = vmatpush1.bf16.msra.mxu0 %v458
          %472 = vmatprep.subr.bf16.mxu0 0
          %473 = vmatpush1.bf16.msra.mxu0 %v457
          %474 = vmatprep.subr.bf16.mxu0 0
          %475 = vmatpush1.bf16.msra.mxu0 %v456
          %476 = vmatprep.subr.bf16.mxu0 0
          %477 = vmatpush1.bf16.msra.mxu0 %v455
          %478 = vmatprep.subr.bf16.mxu0 0
          %479 = vmatpush1.bf16.msra.mxu0 %v454
          %480 = vmatprep.subr.bf16.mxu0 0
          %481 = vmatpush1.bf16.msra.mxu0 %v453
          %482 = vmatprep.subr.bf16.mxu0 0
          %483 = vmatpush1.bf16.msra.mxu0 %v452
          %484 = vmatprep.subr.bf16.mxu0 0
          %485 = vmatpush2.bf16.msra.mxu0 0
          %486 = vmatprep.subr.bf16.mxu0 0
          %487 = vmatpush2.bf16.msra.mxu0 0
          %488 = vmatprep.subr.bf16.mxu0 0
          %489 = vmatpush2.bf16.msra.mxu0 0
          %490 = vmatprep.subr.bf16.mxu0 0
          %491 = vmatpush2.bf16.msra.mxu0 0
          %492 = vmatprep.subr.bf16.mxu0 0
          %493 = vmatpush2.bf16.msra.mxu0 0
          %494 = vmatprep.subr.bf16.mxu0 0
          %495 = vmatpush2.bf16.msra.mxu0 0
          %496 = vmatprep.subr.bf16.mxu0 0
          %497 = vmatpush2.bf16.msra.mxu0 0
          %498 = vmatprep.subr.bf16.mxu0 0
          %499 = vmatpush2.bf16.msra.mxu0 0
          %500 = vmatprep.mubr.bf16.mxu0 0
          %501 = vmatmul.mubr.bf16.gmra.mxu0 %v418
          %v502 = vpop.f32.mrf.mxu0
          %v503 = vadd.f32 %v412, %v502
          %v504 = vpop.f32.mrf.mxu0
          %v505 = vpop.f32.mrf.mxu0
          %v506 = vadd.f32 %v412, %v505
          %v507 = vpop.f32.mrf.mxu0
          %508 = vdwg.mxu0
          %v509 = vmul.f32 %v503, 0.5
          %v510 = vmul.f32 %v506, 0.5
          %v511 = vmul.f32 %v503, 0.70710677
          %v512 = vmul.f32 %v506, 0.70710677
          %v513 = verf.f32.pop %v511
          %v514 = verf.f32.pop %v512
          %v515 = vadd.f32 %v513, 1.0
          %v516 = vadd.f32 %v514, 1.0
          %v517 = vmul.f32 %v509, %v515
          %v518 = vmul.f32 %v510, %v516
          %519 = vadd.xlane.f32.xlu0 %v517
          %v520 = vpop.xlane.xlu0 %519
          %521 = vadd.xlane.f32.xlu0 %v518
          %v522 = vpop.xlane.xlu0 %521
          %v523 = vrcp.pop 128.0
          %v524 = vmul.f32 %v520, %v523
          %v525 = vmul.f32 %v522, %v523
          %v526 = vsub.f32 %v517, %v524
          %v527 = vsub.f32 %v518, %v525
          %v528 = vmul.f32 %v526, %v526
          %v529 = vmul.f32 %v527, %v527
          %530 = vadd.xlane.f32.xlu0 %v528
          %v531 = vpop.xlane.xlu0 %530
          %532 = vadd.xlane.f32.xlu0 %v529
          %v533 = vpop.xlane.xlu0 %532
          %v534 = vmul.f32 %v531, %v523
          %v535 = vmul.f32 %v533, %v523
          %v536 = vadd.f32 %v534, 1e-12
          %v537 = vadd.f32 %v535, 1e-12
          %v538 = vrsqrt.pop %v536
          %v539 = vrsqrt.pop %v537
          %v540 = vmul.f32 %v526, %v538
          %v541 = vmul.f32 %v527, %v539
          %v542 = vld [vmem:[%s3] sm:$0x1]
          %v544 = vlaneseq
          %v545 = vshrl.u32 %v544, 7
          %v546 = vsub.s32 0, %v545
          %v547 = vrot.slane %v542, %v546
          %v549 = vmul.f32 %v540, %v547
          %v550 = vmul.f32 %v541, %v547
          %v551 = vld [vmem:[#allocation8] sm:$0x1]
          %v553 = vlaneseq
          %v554 = vshrl.u32 %v553, 7
          %v555 = vsub.s32 0, %v554
          %v556 = vrot.slane %v551, %v555
          %v558 = vadd.f32 %v549, %v556
          %v559 = vadd.f32 %v550, %v556
          %v560 = vpack.c.bf16 %v559, %v558
          %v562 = vunpack.c.l.b16 %v560
          %v563 = vunpack.c.h.b16 %v560
          %v564 = vpack.c.b16 %v562, %v562
          %v565 = vpack.c.b16 %v563, %v563
          %568 = vst [vmem:[#allocation2] sm:$0xf] %v564
          %569 = vst [vmem:[#allocation2 + $0x4] sm:$0xf] %v565
        $region68: #{tpu_custom_call.1} parent=47 // pred_fallthru
          _
        %v570 = vld [vmem:[#allocation2] sm:$0xf]
        %v571 = vld [vmem:[#allocation2 + $0x4] sm:$0xf]
        %v572 = vld [vmem:[%s340] sm:$0xff]
        %v573 = vld [vmem:[%s340 + $0x8] sm:$0xff]
        %v574 = vld [vmem:[%s340 + $0x10] sm:$0xff]
        %v575 = vld [vmem:[%s340 + $0x18] sm:$0xff]
        %v576 = vld [vmem:[%s340 + $0x20] sm:$0xff]
        %v577 = vld [vmem:[%s340 + $0x28] sm:$0xff]
        %v578 = vld [vmem:[%s340 + $0x30] sm:$0xff]
        %v579 = vld [vmem:[%s340 + $0x38] sm:$0xff]
        %v580 = vld [vmem:[%s340 + $0x40] sm:$0xff]
        %v581 = vld [vmem:[%s340 + $0x48] sm:$0xff]
        %v582 = vld [vmem:[%s340 + $0x50] sm:$0xff]
        %v583 = vld [vmem:[%s340 + $0x58] sm:$0xff]
        %v584 = vld [vmem:[%s340 + $0x60] sm:$0xff]
        %v585 = vld [vmem:[%s340 + $0x68] sm:$0xff]
        %v586 = vld [vmem:[%s340 + $0x70] sm:$0xff]
        %v587 = vld [vmem:[%s340 + $0x78] sm:$0xff]
        %v588 = vld [vmem:[%s340 + $0x80] sm:$0xff]
        %v589 = vld [vmem:[%s340 + $0x88] sm:$0xff]
        %v590 = vld [vmem:[%s340 + $0x90] sm:$0xff]
        %v591 = vld [vmem:[%s340 + $0x98] sm:$0xff]
        %v592 = vld [vmem:[%s340 + $0xa0] sm:$0xff]
        %v593 = vld [vmem:[%s340 + $0xa8] sm:$0xff]
        %v594 = vld [vmem:[%s340 + $0xb0] sm:$0xff]
        %v595 = vld [vmem:[%s340 + $0xb8] sm:$0xff]
        %v596 = vld [vmem:[%s340 + $0xc0] sm:$0xff]
        %v597 = vld [vmem:[%s340 + $0xc8] sm:$0xff]
        %v598 = vld [vmem:[%s340 + $0xd0] sm:$0xff]
        %v599 = vld [vmem:[%s340 + $0xd8] sm:$0xff]
        %v600 = vld [vmem:[%s340 + $0xe0] sm:$0xff]
        %v601 = vld [vmem:[%s340 + $0xe8] sm:$0xff]
        %v602 = vld [vmem:[%s340 + $0xf0] sm:$0xff]
        %v603 = vld [vmem:[%s340 + $0xf8] sm:$0xff]
        %v604 = vld [vmem:[%s380] sm:$0xf]
        %v606 = vlaneseq
        %v607 = vshrl.u32 %v606, 7
        %v608 = vsub.s32 0, %v607
        %v609 = vrot.slane %v604, %v608
        %v610 = vlaneseq
        %v611 = vshrl.u32 %v610, 7
        %v612 = vsub.s32 1, %v611
        %v613 = vrot.slane %v604, %v612
        %v614 = vlaneseq
        %v615 = vshrl.u32 %v614, 7
        %v616 = vsub.s32 2, %v615
        %v617 = vrot.slane %v604, %v616
        %v618 = vlaneseq
        %v619 = vshrl.u32 %v618, 7
        %v620 = vsub.s32 3, %v619
        %v621 = vrot.slane %v604, %v620
        %v628 = vunpack.c.l.b16 %v570
        %v629 = vunpack.c.l.b16 %v571
        %v630 = vpack.c.b16 %v629, %v628
        %v664 = vunpack.c.l.b16 %v572
        %v665 = vunpack.c.h.b16 %v572
        %v666 = vunpack.c.l.b16 %v573
        %v667 = vunpack.c.h.b16 %v573
        %v668 = vunpack.c.l.b16 %v574
        %v669 = vunpack.c.h.b16 %v574
        %v670 = vunpack.c.l.b16 %v575
        %v671 = vunpack.c.h.b16 %v575
        %v672 = vunpack.c.l.b16 %v576
        %v673 = vunpack.c.h.b16 %v576
        %v674 = vunpack.c.l.b16 %v577
        %v675 = vunpack.c.h.b16 %v577
        %v676 = vunpack.c.l.b16 %v578
        %v677 = vunpack.c.h.b16 %v578
        %v678 = vunpack.c.l.b16 %v579
        %v679 = vunpack.c.h.b16 %v579
        %v680 = vunpack.c.l.b16 %v580
        %v681 = vunpack.c.h.b16 %v580
        %v682 = vunpack.c.l.b16 %v581
        %v683 = vunpack.c.h.b16 %v581
        %v684 = vunpack.c.l.b16 %v582
        %v685 = vunpack.c.h.b16 %v582
        %v686 = vunpack.c.l.b16 %v583
        %v687 = vunpack.c.h.b16 %v583
        %v688 = vunpack.c.l.b16 %v584
        %v689 = vunpack.c.h.b16 %v584
        %v690 = vunpack.c.l.b16 %v585
        %v691 = vunpack.c.h.b16 %v585
        %v692 = vunpack.c.l.b16 %v586
        %v693 = vunpack.c.h.b16 %v586
        %v694 = vunpack.c.l.b16 %v587
        %v695 = vunpack.c.h.b16 %v587
        %v696 = vunpack.c.l.b16 %v588
        %v697 = vunpack.c.h.b16 %v588
        %v698 = vunpack.c.l.b16 %v589
        %v699 = vunpack.c.h.b16 %v589
        %v700 = vunpack.c.l.b16 %v590
        %v701 = vunpack.c.h.b16 %v590
        %v702 = vunpack.c.l.b16 %v591
        %v703 = vunpack.c.h.b16 %v591
        %v704 = vunpack.c.l.b16 %v592
        %v705 = vunpack.c.h.b16 %v592
        %v706 = vunpack.c.l.b16 %v593
        %v707 = vunpack.c.h.b16 %v593
        %v708 = vunpack.c.l.b16 %v594
        %v709 = vunpack.c.h.b16 %v594
        %v710 = vunpack.c.l.b16 %v595
        %v711 = vunpack.c.h.b16 %v595
        %v712 = vunpack.c.l.b16 %v596
        %v713 = vunpack.c.h.b16 %v596
        %v714 = vunpack.c.l.b16 %v597
        %v715 = vunpack.c.h.b16 %v597
        %v716 = vunpack.c.l.b16 %v598
        %v717 = vunpack.c.h.b16 %v598
        %v718 = vunpack.c.l.b16 %v599
        %v719 = vunpack.c.h.b16 %v599
        %v720 = vunpack.c.l.b16 %v600
        %v721 = vunpack.c.h.b16 %v600
        %v722 = vunpack.c.l.b16 %v601
        %v723 = vunpack.c.h.b16 %v601
        %v724 = vunpack.c.l.b16 %v602
        %v725 = vunpack.c.h.b16 %v602
        %v726 = vunpack.c.l.b16 %v603
        %v727 = vunpack.c.h.b16 %v603
        %v728 = vpack.c.b16 %v668, %v664
        %v729 = vpack.c.b16 %v669, %v665
        %v730 = vpack.c.b16 %v670, %v666
        %v731 = vpack.c.b16 %v671, %v667
        %v732 = vpack.c.b16 %v676, %v672
        %v733 = vpack.c.b16 %v677, %v673
        %v734 = vpack.c.b16 %v678, %v674
        %v735 = vpack.c.b16 %v679, %v675
        %v736 = vpack.c.b16 %v684, %v680
        %v737 = vpack.c.b16 %v685, %v681
        %v738 = vpack.c.b16 %v686, %v682
        %v739 = vpack.c.b16 %v687, %v683
        %v740 = vpack.c.b16 %v692, %v688
        %v741 = vpack.c.b16 %v693, %v689
        %v742 = vpack.c.b16 %v694, %v690
        %v743 = vpack.c.b16 %v695, %v691
        %v744 = vpack.c.b16 %v700, %v696
        %v745 = vpack.c.b16 %v701, %v697
        %v746 = vpack.c.b16 %v702, %v698
        %v747 = vpack.c.b16 %v703, %v699
        %v748 = vpack.c.b16 %v708, %v704
        %v749 = vpack.c.b16 %v709, %v705
        %v750 = vpack.c.b16 %v710, %v706
        %v751 = vpack.c.b16 %v711, %v707
        %v752 = vpack.c.b16 %v716, %v712
        %v753 = vpack.c.b16 %v717, %v713
        %v754 = vpack.c.b16 %v718, %v714
        %v755 = vpack.c.b16 %v719, %v715
        %v756 = vpack.c.b16 %v724, %v720
        %v757 = vpack.c.b16 %v725, %v721
        %v758 = vpack.c.b16 %v726, %v722
        %v759 = vpack.c.b16 %v727, %v723
        %792 = vmatprep.subr.bf16.mxu0 %v757
        %793 = vmatpush1.bf16.msra.mxu0 %v756
        %794 = vmatprep.subr.bf16.mxu0 %v753
        %795 = vmatpush1.bf16.msra.mxu0 %v752
        %796 = vmatprep.subr.bf16.mxu0 %v749
        %797 = vmatpush1.bf16.msra.mxu0 %v748
        %798 = vmatprep.subr.bf16.mxu0 %v745
        %799 = vmatpush1.bf16.msra.mxu0 %v744
        %800 = vmatprep.subr.bf16.mxu0 %v741
        %801 = vmatpush1.bf16.msra.mxu0 %v740
        %802 = vmatprep.subr.bf16.mxu0 %v737
        %803 = vmatpush1.bf16.msra.mxu0 %v736
        %804 = vmatprep.subr.bf16.mxu0 %v733
        %805 = vmatpush1.bf16.msra.mxu0 %v732
        %806 = vmatprep.subr.bf16.mxu0 %v729
        %807 = vmatpush1.bf16.msra.mxu0 %v728
        %808 = vmatprep.subr.bf16.mxu0 0
        %809 = vmatpush2.bf16.msra.mxu0 0
        %810 = vmatprep.subr.bf16.mxu0 0
        %811 = vmatpush2.bf16.msra.mxu0 0
        %812 = vmatprep.subr.bf16.mxu0 0
        %813 = vmatpush2.bf16.msra.mxu0 0
        %814 = vmatprep.subr.bf16.mxu0 0
        %815 = vmatpush2.bf16.msra.mxu0 0
        %816 = vmatprep.subr.bf16.mxu0 0
        %817 = vmatpush2.bf16.msra.mxu0 0
        %818 = vmatprep.subr.bf16.mxu0 0
        %819 = vmatpush2.bf16.msra.mxu0 0
        %820 = vmatprep.subr.bf16.mxu0 0
        %821 = vmatpush2.bf16.msra.mxu0 0
        %822 = vmatprep.subr.bf16.mxu0 0
        %823 = vmatpush2.bf16.msra.mxu0 0
        %824 = vmatprep.mubr.bf16.mxu0 0
        %825 = vmatmul.mubr.bf16.gmra.mxu0 %v630
        %v826 = vpop.f32.mrf.mxu0
        %v827 = vadd.f32 %v609, %v826
        %v828 = vpop.f32.mrf.mxu0
        %v829 = vadd.f32 %v613, %v828
        %v830 = vpop.f32.mrf.mxu0
        %v831 = vadd.f32 %v609, %v830
        %v832 = vpop.f32.mrf.mxu0
        %v833 = vadd.f32 %v613, %v832
        %834 = vdwg.mxu0
        %835 = vmatprep.subr.bf16.mxu0 %v759
        %836 = vmatpush1.bf16.msra.mxu0 %v758
        %837 = vmatprep.subr.bf16.mxu0 %v755
        %838 = vmatpush1.bf16.msra.mxu0 %v754
        %839 = vmatprep.subr.bf16.mxu0 %v751
        %840 = vmatpush1.bf16.msra.mxu0 %v750
        %841 = vmatprep.subr.bf16.mxu0 %v747
        %842 = vmatpush1.bf16.msra.mxu0 %v746
        %843 = vmatprep.subr.bf16.mxu0 %v743
        %844 = vmatpush1.bf16.msra.mxu0 %v742
        %845 = vmatprep.subr.bf16.mxu0 %v739
        %846 = vmatpush1.bf16.msra.mxu0 %v738
        %847 = vmatprep.subr.bf16.mxu0 %v735
        %848 = vmatpush1.bf16.msra.mxu0 %v734
        %849 = vmatprep.subr.bf16.mxu0 %v731
        %850 = vmatpush1.bf16.msra.mxu0 %v730
        %851 = vmatprep.subr.bf16.mxu0 0
        %852 = vmatpush2.bf16.msra.mxu0 0
        %853 = vmatprep.subr.bf16.mxu0 0
        %854 = vmatpush2.bf16.msra.mxu0 0
        %855 = vmatprep.subr.bf16.mxu0 0
        %856 = vmatpush2.bf16.msra.mxu0 0
        %857 = vmatprep.subr.bf16.mxu0 0
        %858 = vmatpush2.bf16.msra.mxu0 0
        %859 = vmatprep.subr.bf16.mxu0 0
        %860 = vmatpush2.bf16.msra.mxu0 0
        %861 = vmatprep.subr.bf16.mxu0 0
        %862 = vmatpush2.bf16.msra.mxu0 0
        %863 = vmatprep.subr.bf16.mxu0 0
        %864 = vmatpush2.bf16.msra.mxu0 0
        %865 = vmatprep.subr.bf16.mxu0 0
        %866 = vmatpush2.bf16.msra.mxu0 0
        %867 = vmatprep.mubr.bf16.mxu0 0
        %868 = vmatmul.mubr.bf16.gmra.mxu0 %v630
        %v869 = vpop.f32.mrf.mxu0
        %v870 = vadd.f32 %v617, %v869
        %v871 = vpop.f32.mrf.mxu0
        %v872 = vadd.f32 %v621, %v871
        %v873 = vpop.f32.mrf.mxu0
        %v874 = vadd.f32 %v617, %v873
        %v875 = vpop.f32.mrf.mxu0
        %v876 = vadd.f32 %v621, %v875
        %877 = vdwg.mxu0
        %878 = vst [vmem:[%s374] sm:$0xff] %v827
        %879 = vst [vmem:[%s374 + $0x8] sm:$0xff] %v829
        %880 = vst [vmem:[%s374 + $0x10] sm:$0xff] %v870
        %881 = vst [vmem:[%s374 + $0x18] sm:$0xff] %v872
        %882 = vst [vmem:[%s374 + $0x20] sm:$0xff] %v831
        %883 = vst [vmem:[%s374 + $0x28] sm:$0xff] %v833
        %884 = vst [vmem:[%s374 + $0x30] sm:$0xff] %v874
        %885 = vst [vmem:[%s374 + $0x38] sm:$0xff] %v876
        %s886 = sand.u32 %s210, 1
        %s887 = scalar_lea.sflag [#allocation5], %s886
        %s888 = sand.u32 %s210, 1
        %s889 = smul.addr %s888, 64
        %s890 = scalar_lea.vmem [#allocation11], %s889
        // Predicated region
        $region69: #{tpu_custom_call.1} parent=47 // pred_check
          %p891 = pneg %p220
        $region70: #{tpu_custom_call.1} parent=47 // pred_check_branch
          %893 = sbr.rel (%p891) target = $region72
        $region71: #{tpu_custom_call.1} parent=47 // pred_region
          %s894 = smul.u32 2, %s30
          %s895 = smul.u32 4, %s31
          %s897 = ssub.s32 1024, 1024
          %898 = vsyncadd %s887, %s897
          %s899 = smul.addr %s894, 8
          %s900 = sadd.s32 %s895, %s899
          %s901 = smul.addr %s900, 128
          %s902 = scalar_lea.hbm %s7, %s901
          %s903 = sshll.u32 %s890, 4
          %s904 = int_to_ptr.vmem [resolvable:$true] %s903
          %909 = dma.vmem_to_hbm [thread:$0]  %s904, 1024, %s902, %s887, 512, 1024, 32
        $region72: #{tpu_custom_call.1} parent=47 // pred_fallthru
          _
      $region48: #{tpu_custom_call.1} parent=5 // pred_fallthru
        _
      %p910 = scmp.le.s32.totalorder 2, %s21
      // Predicated region
      $region73: #{tpu_custom_call.1} parent=5 // pred_check
        %p911 = pneg %p910
      $region74: #{tpu_custom_call.1} parent=5 // pred_check_branch
        %913 = sbr.rel (%p911) target = $region76
      $region75: #{tpu_custom_call.1} parent=5 // pred_region
        %s914 = ssub.s32 %s21, 2
        // Predicated region
        $region77: #{tpu_custom_call.1} parent=75 // pred_check
          %p915 = pneg %p226
        $region78: #{tpu_custom_call.1} parent=75 // pred_check_branch
          %917 = sbr.rel (%p915) target = $region80
        $region79: #{tpu_custom_call.1} parent=75 // pred_region
          %s918 = sand.u32 %s211, 1
          %s919 = scalar_lea.sflag [#allocation5], %s918
          %s920 = sand.u32 %s211, 1
          %s921 = smul.addr %s920, 64
          %s922 = scalar_lea.vmem [#allocation11], %s921
          %923 = dma.done %s919, 1024
        $region80: #{tpu_custom_call.1} parent=75 // pred_fallthru
          _
      $region76: #{tpu_custom_call.1} parent=5 // pred_fallthru
        _
    $region6: #{tpu_custom_call.1} parent=1 // loop_footer
      %s25 = sadd.s32 1, %s21
    $region7: #{tpu_custom_call.1} parent=1 // loop_footer_branch
      %20 = sbr.rel target = $region3
    $region8: #{tpu_custom_call.1} parent=1 // loop_exit
      _
    %924 = vsyncpa [#allocation4], 1
    %s925 = scalar_lea.sflag [#allocation4], 1
    %926 = vsyncpa %s925, 1
    %927 = vsyncpa [#allocation7], 1
    %928 = vsyncpa [#allocation10], 1
    %s929 = scalar_lea.sflag [#allocation10], 1
    %930 = vsyncpa %s929, 1
    %931 = vsyncpa [#allocation5], 1
    %s932 = scalar_lea.sflag [#allocation5], 1
    %933 = vsyncpa %s932, 1

</llo_original>
